<compile_context>
chip_gen: v7x
topology: tpu7x:2x2x1
jax: 0.10.0
libtpu: 0.0.40
codegen_flags: <defaults>
</compile_context>

<pallas_src>
import math
import functools

import jax
import jax.numpy as jnp
from jax import lax
from jax.experimental import pallas as pl
from jax.experimental.pallas import tpu as pltpu


# ----------------------------------------------------------------------------
# Parameter setup (pure JAX glue, matches the PyTorch __init__).
# ----------------------------------------------------------------------------
def make_positional_encoding(max_len: int, d_model: int, dtype=jnp.float32):
    position = jnp.arange(max_len, dtype=jnp.float32)[:, None]            # (L, 1)
    div_term = jnp.exp(
        jnp.arange(0, d_model, 2, dtype=jnp.float32)
        * (-math.log(10000.0) / d_model)
    )                                                                      # (D/2,)
    pe = jnp.zeros((max_len, d_model), dtype=jnp.float32)
    pe = pe.at[:, 0::2].set(jnp.sin(position * div_term))
    pe = pe.at[:, 1::2].set(jnp.cos(position * div_term))
    # torch: pe.unsqueeze(0).transpose(0, 1) -> (max_len, 1, d_model)
    return pe[:, None, :].astype(dtype)


# ----------------------------------------------------------------------------
# In-kernel dropout helpers (pure jnp, portable to interpret + Mosaic).
# ----------------------------------------------------------------------------
def _splitmix32(h):
    # Low-bias 32-bit avalanche finalizer; h is uint32.
    h = h ^ (h >> 16)
    h = h * jnp.uint32(0x7FEB352D)
    h = h ^ (h >> 15)
    h = h * jnp.uint32(0x846CA68B)
    h = h ^ (h >> 16)
    return h


def _apply_dropout(y, lin_u32, seed_i32, p):
    """Keep-with-prob-(1-p), scale kept values by 1/(1-p).

    Integer-domain decision: hash(absolute index ^ seed) >= p * 2^32.
    """
    thresh = min(max(int(round(p * 2.0 ** 32)), 0), 2 ** 32 - 1)
    seed_u32 = seed_i32.astype(jnp.uint32) * jnp.uint32(0x9E3779B9)
    h = _splitmix32(lin_u32 ^ seed_u32)
    keep = h >= jnp.uint32(thresh)
    scale = jnp.asarray(1.0 / (1.0 - p), dtype=y.dtype)
    return jnp.where(keep, y * scale, jnp.zeros_like(y))


# ----------------------------------------------------------------------------
# Kernels.
# ----------------------------------------------------------------------------
def _pe_dropout_kernel_3d(seed_ref, x_ref, pe_ref, o_ref, *, p, tile_seq):
    # x_ref: (TS, B, D), pe_ref: (TS, 1, D). Compute in the input dtype.
    x = x_ref[...]
    pe = pe_ref[...]
    y = x + pe                                   # broadcast over batch axis

    _, b, d = y.shape
    s_idx = lax.broadcasted_iota(jnp.int32, y.shape, 0).astype(jnp.uint32)
    b_idx = lax.broadcasted_iota(jnp.int32, y.shape, 1).astype(jnp.uint32)
    d_idx = lax.broadcasted_iota(jnp.int32, y.shape, 2).astype(jnp.uint32)
    row0 = (pl.program_id(0) * tile_seq).astype(jnp.uint32)
    lin = ((s_idx + row0) * jnp.uint32(b) + b_idx) * jnp.uint32(d) + d_idx

    o_ref[...] = _apply_dropout(y, lin, seed_ref[0], p).astype(o_ref.dtype)


def _pe_dropout_kernel_2d(seed_ref, x_ref, pe_ref, o_ref, *, p, tile_seq, batch):
    # Lane-dense path (d_model % 128 == 0): x_ref: (TS, B*D), pe_ref: (TS, D).
    x = x_ref[...]
    pe = pe_ref[...]
    pe_row = pe if batch == 1 else jnp.concatenate([pe] * batch, axis=-1)
    y = x + pe_row

    _, w = y.shape
    r_idx = lax.broadcasted_iota(jnp.int32, y.shape, 0).astype(jnp.uint32)
    c_idx = lax.broadcasted_iota(jnp.int32, y.shape, 1).astype(jnp.uint32)
    row0 = (pl.program_id(0) * tile_seq).astype(jnp.uint32)
    lin = (r_idx + row0) * jnp.uint32(w) + c_idx

    o_ref[...] = _apply_dropout(y, lin, seed_ref[0], p).astype(o_ref.dtype)


# ----------------------------------------------------------------------------
# Wrapper.
# ----------------------------------------------------------------------------
def _round_up(n, m):
    return ((n + m - 1) // m) * m


def _auto_tile_seq(S, B, D, itemsize, budget_bytes):
    # Padded VMEM bytes per sequence position of one x/out block.
    if D % 128 == 0:
        per_pos = _round_up(B * D, 128) * itemsize
    else:
        per_pos = _round_up(B, 8) * _round_up(D, 128) * itemsize
    ts = max(1, budget_bytes // per_pos)
    if ts >= S:
        return S
    if ts >= 8:
        return ts - (ts % 8)
    return min(8, S)


def positional_encoding_forward(x, pe_table, seed, *, p=0.1, training=False,
                                tile_seq=None, block_bytes=2 * 1024 * 1024):
    """x: (S, B, D); pe_table: (max_len, 1, D); seed: int32[1]."""
    S, B, D = x.shape
    pe = pe_table[:S, 0, :].astype(x.dtype)              # (S, D) glue slice

    if (not training) or p <= 0.0:
        # Dropout is the identity: a single broadcast add that XLA fuses with
        # neighbouring ops. A custom call here would only add HBM round trips.
        return x + pe[:, None, :]

    if p >= 1.0:
        return jnp.zeros_like(x)

    if tile_seq is None:
        ts = _auto_tile_seq(S, B, D, x.dtype.itemsize, block_bytes)
    else:
        ts = max(1, min(int(tile_seq), S))

    lane_dense = (D % 128 == 0)
    if lane_dense and ts < S and ts % 8 != 0:
        ts = min(S, _round_up(ts, 8))                    # sublane alignment

    grid = (pl.cdiv(S, ts),)
    params = pltpu.CompilerParams(dimension_semantics=("parallel",))

    if lane_dense:
        # Lane-dense presentation: free reshape to (S, B*D); pe replicated
        # across 128-aligned lane groups inside the kernel (keeps pe HBM
        # traffic at (S, D), not (S, B*D)).
        x2 = x.reshape(S, B * D)
        kernel = functools.partial(_pe_dropout_kernel_2d, p=p, tile_seq=ts,
                                   batch=B)
        out2 = pl.pallas_call(
            kernel,
            out_shape=jax.ShapeDtypeStruct((S, B * D), x.dtype),
            grid_spec=pltpu.PrefetchScalarGridSpec(
                num_scalar_prefetch=1,                   # seed lands in SMEM
                grid=grid,
                in_specs=[
                    pl.BlockSpec((ts, B * D), lambda i, s: (i, 0)),
                    pl.BlockSpec((ts, D), lambda i, s: (i, 0)),
                ],
                out_specs=pl.BlockSpec((ts, B * D), lambda i, s: (i, 0)),
            ),
            compiler_params=params,
        )(seed, x2, pe)
        return out2.reshape(S, B, D)

    kernel = functools.partial(_pe_dropout_kernel_3d, p=p, tile_seq=ts)
    return pl.pallas_call(
        kernel,
        out_shape=jax.ShapeDtypeStruct((S, B, D), x.dtype),
        grid_spec=pltpu.PrefetchScalarGridSpec(
            num_scalar_prefetch=1,
            grid=grid,
            in_specs=[
                pl.BlockSpec((ts, B, D), lambda i, s: (i, 0, 0)),
                pl.BlockSpec((ts, 1, D), lambda i, s: (i, 0, 0)),
            ],
            out_specs=pl.BlockSpec((ts, B, D), lambda i, s: (i, 0, 0)),
        ),
        compiler_params=params,
    )(seed, x, pe[:, None, :])


# ----------------------------------------------------------------------------
# Demo / self-check.
# ----------------------------------------------------------------------------
if __name__ == "__main__":
    MAX_LEN = 64
    P = 0.1

    def run_case(S, B, D, tile_seq):
        key = jax.random.PRNGKey(0)
        x = jax.random.normal(key, (S, B, D), dtype=jnp.float32)
        pe_table = make_positional_encoding(MAX_LEN, D, dtype=jnp.float32)
        seed = jnp.array([1234], dtype=jnp.int32)
        ref = x + pe_table[:S]                               # (S, B, D)

        # Eval mode: dropout is identity -> plain fused add, exact match.
        out_eval = jax.block_until_ready(
            positional_encoding_forward(x, pe_table, seed, p=P, training=False))
        assert out_eval.shape == (S, B, D)
        assert jnp.allclose(out_eval, ref, atol=1e-6, rtol=1e-6)

        # Training mode: Pallas kernel (broadcast add + dropout), tiled grid.
        out_train = jax.block_until_ready(
            positional_encoding_forward(x, pe_table, seed, p=P, training=True,
                                        tile_seq=tile_seq))
        assert out_train.shape == (S, B, D)
        scale = 1.0 / (1.0 - P)
        kept = jnp.isclose(out_train, ref * scale, rtol=1e-5, atol=1e-6)
        dropped = jnp.abs(out_train) <= 1e-7
        assert bool(jnp.all(kept | dropped)), "value neither kept nor dropped"
        drop_frac = float(jnp.mean(dropped.astype(jnp.float32)))
        assert 0.0 < drop_frac < 0.5, f"implausible drop fraction {drop_frac}"

    # 3-D path (d_model not a lane multiple), 2 sequence tiles in the grid.
    run_case(S=8, B=2, D=32, tile_seq=4)
    # Lane-dense 2-D path (d_model % 128 == 0), 2 sequence tiles in the grid.
    run_case(S=16, B=2, D=128, tile_seq=8)

    print("KERNEL_OK")
</pallas_src>

<mosaic_0001>
module attributes {stable_mosaic.version = 11 : i64} {
  func.func @_pe_dropout_kernel_3d(%arg0: i32, %arg1: memref<1xi32, #tpu.memory_space<smem>>, %arg2: memref<4x2x32xf32, #tpu.memory_space<vmem>>, %arg3: memref<4x1x32xf32, #tpu.memory_space<vmem>>, %arg4: memref<4x2x32xf32, #tpu.memory_space<vmem>>) attributes {dimension_semantics = [#tpu.dimension_semantics<parallel>], iteration_bounds = array<i64: 2>, scalar_prefetch = 1 : i64, scratch_operands = 0 : i64, tpu.core_type = #tpu.core_type<tc>, window_params = [{transform_indices = @transform_0, window_bounds = array<i64: 4, 2, 32>}, {transform_indices = @transform_1, window_bounds = array<i64: 4, 1, 32>}, {transform_indices = @transform_2, window_bounds = array<i64: 4, 2, 32>}]} {
    %c0 = arith.constant 0 : index
    %c0_0 = arith.constant 0 : index
    %c0_1 = arith.constant 0 : index
    %0 = vector.load %arg2[%c0, %c0_0, %c0_1] : memref<4x2x32xf32, #tpu.memory_space<vmem>>, vector<4x2x32xf32>
    %c0_2 = arith.constant 0 : index
    %c0_3 = arith.constant 0 : index
    %c0_4 = arith.constant 0 : index
    %1 = vector.load %arg3[%c0_2, %c0_3, %c0_4] : memref<4x1x32xf32, #tpu.memory_space<vmem>>, vector<4x1x32xf32>
    %2 = vector.broadcast %1 : vector<4x1x32xf32> to vector<4x2x32xf32>
    %3 = arith.addf %0, %2 : vector<4x2x32xf32>
    %4 = tpu.iota {dimensions = array<i32: 0>} : vector<4x2x32xi32>
    %5 = tpu.iota {dimensions = array<i32: 1>} : vector<4x2x32xi32>
    %6 = tpu.iota {dimensions = array<i32: 2>} : vector<4x2x32xi32>
    %c4_i32 = arith.constant 4 : i32
    %7 = arith.muli %arg0, %c4_i32 : i32
    %8 = vector.broadcast %7 : i32 to vector<4x2x32xi32>
    %9 = arith.addi %4, %8 : vector<4x2x32xi32>
    %c2_i32 = arith.constant 2 : i32
    %10 = vector.broadcast %c2_i32 : i32 to vector<4x2x32xi32>
    %11 = arith.muli %9, %10 : vector<4x2x32xi32>
    %12 = arith.addi %11, %5 : vector<4x2x32xi32>
    %c32_i32 = arith.constant 32 : i32
    %13 = vector.broadcast %c32_i32 : i32 to vector<4x2x32xi32>
    %14 = arith.muli %12, %13 : vector<4x2x32xi32>
    %15 = arith.addi %14, %6 : vector<4x2x32xi32>
    %c0_5 = arith.constant 0 : index
    %16 = memref.load %arg1[%c0_5] : memref<1xi32, #tpu.memory_space<smem>>
    %c-1640531527_i32 = arith.constant -1640531527 : i32
    %17 = arith.muli %16, %c-1640531527_i32 : i32
    %18 = vector.broadcast %17 : i32 to vector<4x2x32xi32>
    %19 = arith.xori %15, %18 : vector<4x2x32xi32>
    %c16_i32 = arith.constant 16 : i32
    %20 = vector.broadcast %c16_i32 : i32 to vector<4x2x32xi32>
    %21 = arith.shrui %19, %20 : vector<4x2x32xi32>
    %22 = arith.xori %19, %21 : vector<4x2x32xi32>
    %c2146121005_i32 = arith.constant 2146121005 : i32
    %23 = vector.broadcast %c2146121005_i32 : i32 to vector<4x2x32xi32>
    %24 = arith.muli %22, %23 : vector<4x2x32xi32>
    %c15_i32 = arith.constant 15 : i32
    %25 = vector.broadcast %c15_i32 : i32 to vector<4x2x32xi32>
    %26 = arith.shrui %24, %25 : vector<4x2x32xi32>
    %27 = arith.xori %24, %26 : vector<4x2x32xi32>
    %c-2073254261_i32 = arith.constant -2073254261 : i32
    %28 = vector.broadcast %c-2073254261_i32 : i32 to vector<4x2x32xi32>
    %29 = arith.muli %27, %28 : vector<4x2x32xi32>
    %c16_i32_6 = arith.constant 16 : i32
    %30 = vector.broadcast %c16_i32_6 : i32 to vector<4x2x32xi32>
    %31 = arith.shrui %29, %30 : vector<4x2x32xi32>
    %32 = arith.xori %29, %31 : vector<4x2x32xi32>
    %c429496730_i32 = arith.constant 429496730 : i32
    %33 = vector.broadcast %c429496730_i32 : i32 to vector<4x2x32xi32>
    %34 = arith.cmpi uge, %32, %33 : vector<4x2x32xi32>
    %cst = arith.constant 1.11111116 : f32
    %35 = vector.broadcast %cst : f32 to vector<4x2x32xf32>
    %36 = arith.mulf %3, %35 : vector<4x2x32xf32>
    %cst_7 = arith.constant 0.000000e+00 : f32
    %37 = vector.broadcast %cst_7 : f32 to vector<4x2x32xf32>
    %38 = arith.select %34, %36, %37 : vector<4x2x32xi1>, vector<4x2x32xf32>
    %c0_8 = arith.constant 0 : index
    %c0_9 = arith.constant 0 : index
    %c0_10 = arith.constant 0 : index
    %39 = vector.load %arg4[%c0_8, %c0_9, %c0_10] : memref<4x2x32xf32, #tpu.memory_space<vmem>>, vector<4x2x32xf32>
    tpu.vector_store %arg4[%c0_8, %c0_9, %c0_10], %38 {strides = array<i32>} : memref<4x2x32xf32, #tpu.memory_space<vmem>>, vector<4x2x32xf32>,
    return
  }
  func.func @transform_0(%arg0: i32, %arg1: memref<1xi32, #tpu.memory_space<smem>>) -> (i32, i32, i32) {
    %c0_i32 = arith.constant 0 : i32
    %c0_i32_0 = arith.constant 0 : i32
    %c0_i32_1 = arith.constant 0 : i32
    return %arg0, %c0_i32, %c0_i32_0 : i32, i32, i32
  }
  func.func @transform_1(%arg0: i32, %arg1: memref<1xi32, #tpu.memory_space<smem>>) -> (i32, i32, i32) {
    %c0_i32 = arith.constant 0 : i32
    %c0_i32_0 = arith.constant 0 : i32
    %c0_i32_1 = arith.constant 0 : i32
    return %arg0, %c0_i32, %c0_i32_0 : i32, i32, i32
  }
  func.func @transform_2(%arg0: i32, %arg1: memref<1xi32, #tpu.memory_space<smem>>) -> (i32, i32, i32) {
    %c0_i32 = arith.constant 0 : i32
    %c0_i32_0 = arith.constant 0 : i32
    %c0_i32_1 = arith.constant 0 : i32
    return %arg0, %c0_i32, %c0_i32_0 : i32, i32, i32
  }
}

</mosaic_0001>

<llo_original>
// kernel: tpu_custom_call.1
$region0: #{tpu_custom_call.1}
  #allocation0 [shape = 'u32[]', space=smem, size = 0x4, offset = 0x4, fixed_abs, tag = 'smem constant byte address 0x4 - core index']
  #allocation1 [shape = 'u32[144,128]{1,0:T(1,128)}', space=vmem, size = 0x12000, scoped, tag = 'internal scratch']
  #allocation2 [shape = 's32[1]{0}', space=sflag, size = 0x4, scoped, tag = 'scoped memory for tpu_custom_call.1']
  #allocation3 [shape = 's32[1]{0:T(128)S(6)}', space=smem, size = 0x200, scoped, tag = 'prefetched SMEM operand 0']
  %s0 = inlined_call_operand.<no memory space> [shape: s32[1], index: 0, kind: input, shape index: {}]
  %s1 = inlined_call_operand.hbm [shape: f32[8,2,32], index: 1, kind: input, shape index: {}]
  %s2 = inlined_call_operand.hbm [shape: f32[8,1,32], index: 2, kind: input, shape index: {}]
  %s3 = inlined_call_operand.hbm [shape: f32[8,2,32], index: 3, kind: output, shape index: {}]
  %s4 = sld [smem:[#allocation0]]
  $region49: #{tpu_custom_call.1} parent=0
    _
  %s6 = ssub.s32 1, %s4
  %s7 = scalar_select 0, %s6, %s4
  %8 = sst [smem:[#allocation3]] %s0
  $region1: #{tpu_custom_call.1} parent=0
    #allocation4 [shape = 'u8[8192]{0}', space=vmem, size = 0x2000, scoped, tag = 'input window, operand 1']
    #allocation5 [shape = 's32[2]{0}', space=sflag, size = 0x8, scoped, tag = 'scoped memory for tpu_custom_call.1']
    #allocation6 [shape = 's32[2]{0}', space=sflag, size = 0x8, scoped, tag = 'scoped memory for tpu_custom_call.1']
    #allocation7 [shape = 'u8[4096]{0}', space=vmem, size = 0x1000, scoped, tag = 'input window, operand 2']
    #allocation8 [shape = 's32[2]{0}', space=sflag, size = 0x8, scoped, tag = 'scoped memory for tpu_custom_call.1']
    #allocation9 [shape = 'u8[8192]{0}', space=vmem, size = 0x2000, scoped, tag = 'output window, operand 0']
    %9 = vsyncpa [#allocation5], 0
    %s10 = scalar_lea.sflag [#allocation5], 1
    %11 = vsyncpa %s10, 0
    %12 = vsyncpa [#allocation8], 0
    %s13 = scalar_lea.sflag [#allocation8], 1
    %14 = vsyncpa %s13, 0
    %15 = vsyncpa [#allocation6], 0
    %s16 = scalar_lea.sflag [#allocation6], 1
    %17 = vsyncpa %s16, 0
    loop: start=0, step=1, limit=4
    $region2: #{tpu_custom_call.1} parent=1 // loop_pre_header
      _
    $region3: #{tpu_custom_call.1} parent=1 // loop_header
      %s19 = sphi 0, %s23
      %p20 = scmp.ge.s32.totalorder %s19, 4
      %s29 = sphi 0, %s31
      %s32 = sphi 0, %s29
      %s33 = sphi 0, %s32
      %s49 = sphi 0, %s33
      %s55 = sphi 0, %s57
      %s58 = sphi 0, %s55
      %s59 = sphi 0, %s58
      %s75 = sphi 0, %s59
      %s81 = sphi 0, %s83
      %s84 = sphi 0, %s81
      %s85 = sphi 0, %s84
      %s101 = sphi 0, %s85
    $region4: #{tpu_custom_call.1} parent=1 // loop_header_branch
      %22 = sbr.rel (%p20) target = $region8
    $region5: #{tpu_custom_call.1} parent=1 // loop_body
      %s24 = ssub.s32 %s19, 1
      %s25 = ssub.s32 %s19, 2
      %s26 = sadd.s32 %s19, 1
      %s27 = ssub.s32 %s19, %s26
      %p28 = scmp.eq.s32.totalorder %s27, 0
      %s30 = sadd.s32 %s29, 1
      %s31 = scalar_select %p28, %s29, %s30
      %p34 = pneg %p28
      %p35 = scmp.eq.s32.totalorder %s19, 1
      %p36 = por %p34, %p35
      %p37 = scmp.ne.s32.totalorder %s29, %s32
      %p38 = scmp.eq.s32.totalorder %s19, 0
      %p39 = por %p37, %p38
      %p40 = scmp.ne.s32.totalorder %s29, %s32
      %p41 = scmp.eq.s32.totalorder %s24, 1
      %p42 = por %p40, %p41
      %p43 = scmp.ne.s32.totalorder %s32, %s33
      %p44 = scmp.eq.s32.totalorder %s24, 0
      %p45 = por %p43, %p44
      %p46 = scmp.ne.s32.totalorder %s32, %s33
      %p47 = scmp.eq.s32.totalorder %s25, 1
      %p48 = por %p46, %p47
      %p50 = scmp.ne.s32.totalorder %s33, %s49
      %p51 = scmp.eq.s32.totalorder %s25, 0
      %p52 = por %p50, %p51
      %s53 = ssub.s32 %s19, %s26
      %p54 = scmp.eq.s32.totalorder %s53, 0
      %s56 = sadd.s32 %s55, 1
      %s57 = scalar_select %p54, %s55, %s56
      %p60 = pneg %p54
      %p61 = scmp.eq.s32.totalorder %s19, 1
      %p62 = por %p60, %p61
      %p63 = scmp.ne.s32.totalorder %s55, %s58
      %p64 = scmp.eq.s32.totalorder %s19, 0
      %p65 = por %p63, %p64
      %p66 = scmp.ne.s32.totalorder %s55, %s58
      %p67 = scmp.eq.s32.totalorder %s24, 1
      %p68 = por %p66, %p67
      %p69 = scmp.ne.s32.totalorder %s58, %s59
      %p70 = scmp.eq.s32.totalorder %s24, 0
      %p71 = por %p69, %p70
      %p72 = scmp.ne.s32.totalorder %s58, %s59
      %p73 = scmp.eq.s32.totalorder %s25, 1
      %p74 = por %p72, %p73
      %p76 = scmp.ne.s32.totalorder %s59, %s75
      %p77 = scmp.eq.s32.totalorder %s25, 0
      %p78 = por %p76, %p77
      %s79 = ssub.s32 %s19, %s26
      %p80 = scmp.eq.s32.totalorder %s79, 0
      %s82 = sadd.s32 %s81, 1
      %s83 = scalar_select %p80, %s81, %s82
      %p86 = pneg %p80
      %p87 = scmp.eq.s32.totalorder %s19, 1
      %p88 = por %p86, %p87
      %p89 = scmp.ne.s32.totalorder %s81, %s84
      %p90 = scmp.eq.s32.totalorder %s19, 0
      %p91 = por %p89, %p90
      %p92 = scmp.ne.s32.totalorder %s81, %s84
      %p93 = scmp.eq.s32.totalorder %s24, 1
      %p94 = por %p92, %p93
      %p95 = scmp.ne.s32.totalorder %s84, %s85
      %p96 = scmp.eq.s32.totalorder %s24, 0
      %p97 = por %p95, %p96
      %p98 = scmp.ne.s32.totalorder %s84, %s85
      %p99 = scmp.eq.s32.totalorder %s25, 1
      %p100 = por %p98, %p99
      %p102 = scmp.ne.s32.totalorder %s85, %s101
      %p103 = scmp.eq.s32.totalorder %s25, 0
      %p104 = por %p102, %p103
      %p105 = scmp.le.s32.totalorder 1, %s19
      %p106 = scmp.lt.s32.totalorder %s19, 3
      %p107 = pnand %p105, %p106
      %p108 = pneg %p107
      // Predicated region
      $region9: #{tpu_custom_call.1} parent=5 // pred_check
        _
      $region10: #{tpu_custom_call.1} parent=5 // pred_check_branch
        %110 = sbr.rel (%p107) target = $region12
      $region11: #{tpu_custom_call.1} parent=5 // pred_region
        %s111 = ssub.s32 %s19, 1
      $region12: #{tpu_custom_call.1} parent=5 // pred_fallthru
        _
      %p112 = scmp.lt.s32.totalorder %s19, 2
      // Predicated region
      $region13: #{tpu_custom_call.1} parent=5 // pred_check
        %p113 = pneg %p112
      $region14: #{tpu_custom_call.1} parent=5 // pred_check_branch
        %115 = sbr.rel (%p113) target = $region16
      $region15: #{tpu_custom_call.1} parent=5 // pred_region
        // Predicated region
        $region17: #{tpu_custom_call.1} parent=15 // pred_check
          %p116 = pneg %p39
        $region18: #{tpu_custom_call.1} parent=15 // pred_check_branch
          %118 = sbr.rel (%p116) target = $region20
        $region19: #{tpu_custom_call.1} parent=15 // pred_region
          %s119 = sand.u32 %s29, 1
          %s120 = scalar_lea.sflag [#allocation5], %s119
          %s121 = sand.u32 %s29, 1
          %s122 = smul.addr %s121, 8
          %s123 = scalar_lea.vmem [#allocation4], %s122
          %s124 = smul.u32 4, %s19
          %s126 = ssub.s32 128, 128
          %127 = vsyncadd %s120, %s126
          %s128 = smul.addr %s124, 32
          %s129 = scalar_lea.hbm %s1, %s128
          %s130 = sshll.u32 %s123, 4
          %s131 = int_to_ptr.vmem [resolvable:$true] %s130
          %136 = dma.hbm_to_vmem [thread:$0]  %s129, 128, %s131, %s120, 32, 32, 2
        $region20: #{tpu_custom_call.1} parent=15 // pred_fallthru
          _
        // Predicated region
        $region21: #{tpu_custom_call.1} parent=15 // pred_check
          %p137 = pneg %p65
        $region22: #{tpu_custom_call.1} parent=15 // pred_check_branch
          %139 = sbr.rel (%p137) target = $region24
        $region23: #{tpu_custom_call.1} parent=15 // pred_region
          %s140 = sand.u32 %s55, 1
          %s141 = scalar_lea.sflag [#allocation8], %s140
          %s142 = sand.u32 %s55, 1
          %s143 = smul.addr %s142, 4
          %s144 = scalar_lea.vmem [#allocation7], %s143
          %s145 = smul.u32 4, %s19
          %s147 = ssub.s32 64, 64
          %148 = vsyncadd %s141, %s147
          %s149 = smul.addr %s145, 16
          %s150 = scalar_lea.hbm %s2, %s149
          %s151 = sshll.u32 %s144, 4
          %s152 = int_to_ptr.vmem [resolvable:$true] %s151
          %157 = dma.hbm_to_vmem [thread:$0]  %s150, 64, %s152, %s141, 16, 16, 1
        $region24: #{tpu_custom_call.1} parent=15 // pred_fallthru
          _
      $region16: #{tpu_custom_call.1} parent=5 // pred_fallthru
        _
      %p158 = scmp.le.s32.totalorder 1, %s19
      %p159 = scmp.lt.s32.totalorder %s19, 3
      %p160 = pnand %p158, %p159
      %p161 = pneg %p160
      // Predicated region
      $region25: #{tpu_custom_call.1} parent=5 // pred_check
        _
      $region26: #{tpu_custom_call.1} parent=5 // pred_check_branch
        %163 = sbr.rel (%p160) target = $region28
      $region27: #{tpu_custom_call.1} parent=5 // pred_region
        %s164 = ssub.s32 %s19, 1
        %s165 = sand.u32 %s32, 1
        %s166 = scalar_lea.sflag [#allocation5], %s165
        %s167 = sand.u32 %s32, 1
        %s168 = smul.addr %s167, 8
        %s169 = scalar_lea.vmem [#allocation4], %s168
        // Predicated region
        $region29: #{tpu_custom_call.1} parent=27 // pred_check
          %p170 = pneg %p45
        $region30: #{tpu_custom_call.1} parent=27 // pred_check_branch
          %172 = sbr.rel (%p170) target = $region32
        $region31: #{tpu_custom_call.1} parent=27 // pred_region
          %173 = dma.done %s166, 128
        $region32: #{tpu_custom_call.1} parent=27 // pred_fallthru
          _
        %s174 = sand.u32 %s58, 1
        %s175 = scalar_lea.sflag [#allocation8], %s174
        %s176 = sand.u32 %s58, 1
        %s177 = smul.addr %s176, 4
        %s178 = scalar_lea.vmem [#allocation7], %s177
        // Predicated region
        $region33: #{tpu_custom_call.1} parent=27 // pred_check
          %p179 = pneg %p71
        $region34: #{tpu_custom_call.1} parent=27 // pred_check_branch
          %181 = sbr.rel (%p179) target = $region36
        $region35: #{tpu_custom_call.1} parent=27 // pred_region
          %182 = dma.done %s175, 64
        $region36: #{tpu_custom_call.1} parent=27 // pred_fallthru
          _
        %s183 = sand.u32 %s32, 1
        %s184 = scalar_lea.sflag [#allocation5], %s183
        %s185 = sand.u32 %s32, 1
        %s186 = smul.addr %s185, 8
        %s187 = scalar_lea.vmem [#allocation4], %s186
        %p188 = pneg %p45
        %p189 = pneg %p42
        %s190 = sand.u32 %s58, 1
        %s191 = scalar_lea.sflag [#allocation8], %s190
        %s192 = sand.u32 %s58, 1
        %s193 = smul.addr %s192, 4
        %s194 = scalar_lea.vmem [#allocation7], %s193
        %p195 = pneg %p71
        %p196 = pneg %p68
        %p197 = pneg %p97
        %p198 = pneg %p94
        %s199 = sand.u32 %s84, 1
        %s200 = scalar_lea.sflag [#allocation6], %s199
        %s201 = sand.u32 %s84, 1
        %s202 = smul.addr %s201, 8
        %s203 = scalar_lea.vmem [#allocation9], %s202
        %s204 = smul.u32 4, %s24
        %s205 = smul.u32 4, %s24
        %s206 = smul.u32 4, %s24
        %v207 = vld [vmem:[%s169] sm:$0x3]
        %v208 = vld [vmem:[%s169 + $0x2] sm:$0x3]
        %v209 = vld [vmem:[%s169 + $0x4] sm:$0x3]
        %v210 = vld [vmem:[%s169 + $0x6] sm:$0x3]
        %v211 = vld [vmem:[%s178] sm:$0x1]
        %v212 = vld [vmem:[%s178 + $0x1] sm:$0x1]
        %v213 = vld [vmem:[%s178 + $0x2] sm:$0x1]
        %v214 = vld [vmem:[%s178 + $0x3] sm:$0x1]
        %v219 = vlaneseq
        %v220 = vshrl.u32 %v219, 7
        %v221 = vsub.s32 0, %v220
        %v222 = vrot.slane %v211, %v221
        %v223 = vlaneseq
        %v224 = vshrl.u32 %v223, 7
        %v225 = vsub.s32 0, %v224
        %v226 = vrot.slane %v212, %v225
        %v227 = vlaneseq
        %v228 = vshrl.u32 %v227, 7
        %v229 = vsub.s32 0, %v228
        %v230 = vrot.slane %v213, %v229
        %v231 = vlaneseq
        %v232 = vshrl.u32 %v231, 7
        %v233 = vsub.s32 0, %v232
        %v234 = vrot.slane %v214, %v233
        %v239 = vadd.f32 %v207, %v222
        %v240 = vadd.f32 %v208, %v226
        %v241 = vadd.f32 %v209, %v230
        %v242 = vadd.f32 %v210, %v234
        %v243 = vlaneseq
        %v244 = vshrl.u32 %v243, 7
        %v245 = vlaneseq
        %v246 = vand.u32 %v245, 127
        %s247 = smul.u32 %s24, 4
        %v248 = vstv %s247
        %v249 = vadd.s32 %v248, 1
        %v250 = vadd.s32 %v248, 2
        %v251 = vadd.s32 %v248, 3
        %v252 = vmul.u32 %v248, 2
        %v253 = vmul.u32 %v249, 2
        %v254 = vmul.u32 %v250, 2
        %v255 = vmul.u32 %v251, 2
        %v256 = vadd.s32 %v252, %v244
        %v257 = vadd.s32 %v253, %v244
        %v258 = vadd.s32 %v254, %v244
        %v259 = vadd.s32 %v255, %v244
        %v260 = vmul.u32 %v256, 32
        %v261 = vmul.u32 %v257, 32
        %v262 = vmul.u32 %v258, 32
        %v263 = vmul.u32 %v259, 32
        %v264 = vadd.s32 %v260, %v246
        %v265 = vadd.s32 %v261, %v246
        %v266 = vadd.s32 %v262, %v246
        %v267 = vadd.s32 %v263, %v246
        %s268 = sld [smem:[#allocation3]]
        %s269 = smul.u32 %s268, 2654435769
        %v270 = vstv %s269
        %v271 = vxor.u32 %v264, %v270
        %v272 = vxor.u32 %v265, %v270
        %v273 = vxor.u32 %v266, %v270
        %v274 = vxor.u32 %v267, %v270
        %v275 = vshrl.u32 %v271, 16
        %v276 = vshrl.u32 %v272, 16
        %v277 = vshrl.u32 %v273, 16
        %v278 = vshrl.u32 %v274, 16
        %v279 = vxor.u32 %v271, %v275
        %v280 = vxor.u32 %v272, %v276
        %v281 = vxor.u32 %v273, %v277
        %v282 = vxor.u32 %v274, %v278
        %v283 = vmul.u32 %v279, 2146121005
        %v284 = vmul.u32 %v280, 2146121005
        %v285 = vmul.u32 %v281, 2146121005
        %v286 = vmul.u32 %v282, 2146121005
        %v287 = vshrl.u32 %v283, 15
        %v288 = vshrl.u32 %v284, 15
        %v289 = vshrl.u32 %v285, 15
        %v290 = vshrl.u32 %v286, 15
        %v291 = vxor.u32 %v283, %v287
        %v292 = vxor.u32 %v284, %v288
        %v293 = vxor.u32 %v285, %v289
        %v294 = vxor.u32 %v286, %v290
        %v295 = vmul.u32 %v291, 2221713035
        %v296 = vmul.u32 %v292, 2221713035
        %v297 = vmul.u32 %v293, 2221713035
        %v298 = vmul.u32 %v294, 2221713035
        %v299 = vshrl.u32 %v295, 16
        %v300 = vshrl.u32 %v296, 16
        %v301 = vshrl.u32 %v297, 16
        %v302 = vshrl.u32 %v298, 16
        %v303 = vxor.u32 %v295, %v299
        %v304 = vxor.u32 %v296, %v300
        %v305 = vxor.u32 %v297, %v301
        %v306 = vxor.u32 %v298, %v302
        %vm307 = vcmp.ge.u32.totalorder %v303, 429496730
        %vm308 = vcmp.ge.u32.totalorder %v304, 429496730
        %vm309 = vcmp.ge.u32.totalorder %v305, 429496730
        %vm310 = vcmp.ge.u32.totalorder %v306, 429496730
        %v311 = vmul.f32 %v239, 1.1111112
        %v312 = vmul.f32 %v240, 1.1111112
        %v313 = vmul.f32 %v241, 1.1111112
        %v314 = vmul.f32 %v242, 1.1111112
        %v315 = vsel %vm307, %v311, 0.0
        %v316 = vsel %vm308, %v312, 0.0
        %v317 = vsel %vm309, %v313, 0.0
        %v318 = vsel %vm310, %v314, 0.0
        %vm319 = vcmask 254976
        %320 = vst.msk [vmem:[%s203] sm:$0x3] %vm319, %v315
        %321 = vst.msk [vmem:[%s203 + $0x2] sm:$0x3] %vm319, %v316
        %322 = vst.msk [vmem:[%s203 + $0x4] sm:$0x3] %vm319, %v317
        %323 = vst.msk [vmem:[%s203 + $0x6] sm:$0x3] %vm319, %v318
        %s324 = sand.u32 %s84, 1
        %s325 = scalar_lea.sflag [#allocation6], %s324
        %s326 = sand.u32 %s84, 1
        %s327 = smul.addr %s326, 8
        %s328 = scalar_lea.vmem [#allocation9], %s327
        // Predicated region
        $region37: #{tpu_custom_call.1} parent=27 // pred_check
          %p329 = pneg %p94
        $region38: #{tpu_custom_call.1} parent=27 // pred_check_branch
          %331 = sbr.rel (%p329) target = $region40
        $region39: #{tpu_custom_call.1} parent=27 // pred_region
          %s332 = smul.u32 4, %s24
          %s334 = ssub.s32 128, 128
          %335 = vsyncadd %s325, %s334
          %s336 = smul.addr %s332, 32
          %s337 = scalar_lea.hbm %s3, %s336
          %s338 = sshll.u32 %s328, 4
          %s339 = int_to_ptr.vmem [resolvable:$true] %s338
          %344 = dma.vmem_to_hbm [thread:$0]  %s339, 128, %s337, %s325, 32, 32, 2
        $region40: #{tpu_custom_call.1} parent=27 // pred_fallthru
          _
      $region28: #{tpu_custom_call.1} parent=5 // pred_fallthru
        _
      %p345 = scmp.le.s32.totalorder 2, %s19
      // Predicated region
      $region41: #{tpu_custom_call.1} parent=5 // pred_check
        %p346 = pneg %p345
      $region42: #{tpu_custom_call.1} parent=5 // pred_check_branch
        %348 = sbr.rel (%p346) target = $region44
      $region43: #{tpu_custom_call.1} parent=5 // pred_region
        %s349 = ssub.s32 %s19, 2
        // Predicated region
        $region45: #{tpu_custom_call.1} parent=43 // pred_check
          %p350 = pneg %p100
        $region46: #{tpu_custom_call.1} parent=43 // pred_check_branch
          %352 = sbr.rel (%p350) target = $region48
        $region47: #{tpu_custom_call.1} parent=43 // pred_region
          %s353 = sand.u32 %s85, 1
          %s354 = scalar_lea.sflag [#allocation6], %s353
          %s355 = sand.u32 %s85, 1
          %s356 = smul.addr %s355, 8
          %s357 = scalar_lea.vmem [#allocation9], %s356
          %358 = dma.done %s354, 128
        $region48: #{tpu_custom_call.1} parent=43 // pred_fallthru
          _
      $region44: #{tpu_custom_call.1} parent=5 // pred_fallthru
        _
    $region6: #{tpu_custom_call.1} parent=1 // loop_footer
      %s23 = sadd.s32 1, %s19
    $region7: #{tpu_custom_call.1} parent=1 // loop_footer_branch
      %18 = sbr.rel target = $region3
    $region8: #{tpu_custom_call.1} parent=1 // loop_exit
      _
    %359 = vsyncpa [#allocation5], 1
    %s360 = scalar_lea.sflag [#allocation5], 1
    %361 = vsyncpa %s360, 1
    %362 = vsyncpa [#allocation8], 1
    %s363 = scalar_lea.sflag [#allocation8], 1
    %364 = vsyncpa %s363, 1
    %365 = vsyncpa [#allocation6], 1
    %s366 = scalar_lea.sflag [#allocation6], 1
    %367 = vsyncpa %s366, 1

</llo_original>
